<compile_context>
chip_gen: v7x
topology: tpu7x:2x2x1
jax: 0.10.0
libtpu: 0.0.40
codegen_flags: <defaults>
</compile_context>

<pallas_src>
import jax
import jax.numpy as jnp
from jax.experimental import pallas as pl
from jax.experimental.pallas import tpu as pltpu


def _round_up(x, m):
    return (x + m - 1) // m * m


def _vmem_cap_bytes():
    try:
        return int(pltpu.get_tpu_info().vmem_capacity_bytes)
    except Exception:
        return 128 << 20


def conv_downsampling(x, w, b, gamma, beta, *, eps=1e-5):
    """Conv2d(3x3, stride 2, pad 1) -> BatchNorm2d (batch stats) -> LeakyReLU(0.1).

    `b` (the conv bias) is accepted for API parity but mathematically cancels
    against the training-mode BatchNorm shift, so it is never used.
    """
    del b
    N, Cin, H, W = x.shape
    Cout = w.shape[0]
    Ho = (H - 1) // 2 + 1
    Wo = (W - 1) // 2 + 1
    Wp = Wo + 1                      # padded row length (1 junk column per row)
    L = Ho * Wp                      # flat, padded pixel axis of the conv output
    Lp = (Ho + 2) * Wp               # flat phase-plane length (>= L + Wp + 1)

    # ---- wrapper glue: pad + bf16 cast + 4-phase stride-2 split + flatten ----
    Hpad = 2 * (Ho + 2)
    Wpad = 2 * Wp
    xp = jnp.pad(x.astype(jnp.bfloat16),
                 ((0, 0), (0, 0), (1, Hpad - H - 1), (1, Wpad - W - 1)))
    phases = jnp.stack(
        [xp[:, :, r::2, s::2].reshape(N, Cin, Lp) for r in (0, 1) for s in (0, 1)],
        axis=1)                                          # (N, 4, Cin, Lp) bf16

    # tap (kh, kw) -> phase plane index and flat lane shift
    tap_phase, tap_shift = [], []
    for kh in range(3):
        for kw in range(3):
            tap_phase.append((kh % 2) * 2 + (kw % 2))
            tap_shift.append((kh // 2) * Wp + (kw // 2))

    # per-tap weights: (9, Cout, Cin) bf16 (MXU operands only are bf16)
    w_taps = jnp.transpose(w, (2, 3, 0, 1)).reshape(9, Cout, Cin).astype(jnp.bfloat16)

    # mask of valid lanes for the BN statistics (junk column = last of each row)
    mask = (jnp.arange(L, dtype=jnp.int32) % Wp < Wo).astype(jnp.float32).reshape(1, L)

    # ---- Cout tile: fit the generation's VMEM, keep >=2 steps for v7x megacore ----
    cap = _vmem_cap_bytes()
    budget = min(int(0.55 * cap), 48 << 20)

    def est1(ct_):
        return (2 * 4 * Cin * Lp * 2          # phase planes, double-buffered, bf16
                + 2 * 9 * ct_ * Cin * 2       # per-tap weights, double-buffered
                + 2 * ct_ * L * 2             # y output blocks, bf16
                + 3 * ct_ * L * 4             # f32 accumulator + temporaries
                + L * 4 + (2 << 20))

    ct = Cout
    while ct > 8 and est1(ct) > budget:
        ct = _round_up(ct // 2, 8)
    if N == 1 and Cout >= 16 and ct == Cout:
        ct = _round_up(pl.cdiv(Cout, 2), 8)   # give both v7x TensorCores a step
    nct = pl.cdiv(Cout, ct)
    vmem1 = int(min(0.8 * cap, max(32 << 20, 1.5 * est1(ct))))

    # ---- kernel 1: fused phase-plane conv + per-tile BN partial statistics ----
    def conv_stats_kernel(ph_ref, w_ref, m_ref, y_ref, sum_ref, sq_ref):
        acc = None
        for t in range(9):
            p = tap_phase[t]
            d = tap_shift[t]
            part = jnp.dot(w_ref[t], ph_ref[0, p, :, d:d + L],
                           preferred_element_type=jnp.float32)   # (ct, L) f32
            acc = part if acc is None else acc + part
        y_ref[0] = acc.astype(y_ref.dtype)
        am = acc * m_ref[...]                          # zero out junk columns
        sum_ref[0] = jnp.sum(am, axis=1, keepdims=True)
        sq_ref[0] = jnp.sum(am * acc, axis=1, keepdims=True)

    y_flat, psum, psq = pl.pallas_call(
        conv_stats_kernel,
        out_shape=(
            jax.ShapeDtypeStruct((N, Cout, L), jnp.bfloat16),
            jax.ShapeDtypeStruct((N, Cout, 1), jnp.float32),
            jax.ShapeDtypeStruct((N, Cout, 1), jnp.float32),
        ),
        grid=(N, nct),
        in_specs=[
            pl.BlockSpec((1, 4, Cin, Lp), lambda n, c: (n, 0, 0, 0)),
            pl.BlockSpec((9, ct, Cin), lambda n, c: (0, c, 0)),
            pl.BlockSpec((1, L), lambda n, c: (0, 0)),
        ],
        out_specs=(
            pl.BlockSpec((1, ct, L), lambda n, c: (n, c, 0)),
            pl.BlockSpec((1, ct, 1), lambda n, c: (n, c, 0)),
            pl.BlockSpec((1, ct, 1), lambda n, c: (n, c, 0)),
        ),
        compiler_params=pltpu.CompilerParams(
            dimension_semantics=("parallel", "parallel"),
            vmem_limit_bytes=vmem1),
    )(phases, w_taps, mask)

    # ---- training-mode batch statistics and folded affine (bias-free) ----
    cnt = float(N * Ho * Wo)
    s = jnp.sum(psum, axis=0) / cnt                  # (Cout, 1) mean (no bias)
    sq = jnp.sum(psq, axis=0) / cnt
    var = jnp.maximum(sq - s * s, 0.0)
    invstd = jax.lax.rsqrt(var + eps)
    scale = gamma.reshape(Cout, 1).astype(jnp.float32) * invstd
    shift = beta.reshape(Cout, 1).astype(jnp.float32) - s * scale
    scale3 = scale.reshape(Cout, 1, 1)
    shift3 = shift.reshape(Cout, 1, 1)

    # ---- kernel 2: folded BN affine + LeakyReLU(0.1), direct NCHW f32 out ----
    lane_pad = _round_up(Wp, 128)

    def est2(ct_, th_):
        th_p = _round_up(th_, 8)
        return (2 * ct_ * th_p * lane_pad * 2
                + 2 * ct_ * th_p * lane_pad * 4
                + 2 * ct_ * th_p * lane_pad * 4
                + (1 << 20))

    th = Ho
    if Ho > 8 and est2(ct, Ho) > budget:
        th = max(8, (Ho // 2) // 8 * 8)
        while th > 8 and est2(ct, th) > budget:
            th = max(8, (th // 2) // 8 * 8)
    nht = pl.cdiv(Ho, th)
    vmem2 = int(min(0.8 * cap, max(32 << 20, 1.5 * est2(ct, th))))

    y4 = y_flat.reshape(N, Cout, Ho, Wp)             # contiguous: free reshape

    def bn_act_kernel(y_ref, sc_ref, sh_ref, o_ref):
        z = y_ref[0, :, :, :Wo].astype(jnp.float32) * sc_ref[...] + sh_ref[...]
        o_ref[0] = jnp.where(z >= 0, z, 0.1 * z).astype(o_ref.dtype)

    out = pl.pallas_call(
        bn_act_kernel,
        out_shape=jax.ShapeDtypeStruct((N, Cout, Ho, Wo), jnp.float32),
        grid=(N, nct, nht),
        in_specs=[
            pl.BlockSpec((1, ct, th, Wp), lambda n, c, j: (n, c, j, 0)),
            pl.BlockSpec((ct, 1, 1), lambda n, c, j: (c, 0, 0)),
            pl.BlockSpec((ct, 1, 1), lambda n, c, j: (c, 0, 0)),
        ],
        out_specs=pl.BlockSpec((1, ct, th, Wo), lambda n, c, j: (n, c, j, 0)),
        compiler_params=pltpu.CompilerParams(
            dimension_semantics=("parallel", "parallel", "parallel"),
            vmem_limit_bytes=vmem2),
    )(y4, scale3, shift3)

    return out


def _reference(x, w, b, gamma, beta, eps=1e-5):
    """Pure-JAX f32 reference (training-mode BN), bias included."""
    y = jax.lax.conv_general_dilated(
        x.astype(jnp.float32), w.astype(jnp.float32),
        window_strides=(2, 2), padding=((1, 1), (1, 1)),
        dimension_numbers=("NCHW", "OIHW", "NCHW"))
    y = y + b.reshape(1, -1, 1, 1)
    mean = jnp.mean(y, axis=(0, 2, 3), keepdims=True)
    var = jnp.mean((y - mean) ** 2, axis=(0, 2, 3), keepdims=True)
    z = (y - mean) / jnp.sqrt(var + eps)
    z = z * gamma.reshape(1, -1, 1, 1) + beta.reshape(1, -1, 1, 1)
    return jnp.where(z >= 0, z, 0.1 * z)


if __name__ == "__main__":
    def run_case(N, Cin, H, W, Cout, seed=0):
        key = jax.random.PRNGKey(seed)
        kw_, kb_, kg_, kbt_, kx_ = jax.random.split(key, 5)
        w = 0.1 * jax.random.normal(kw_, (Cout, Cin, 3, 3), jnp.float32)
        b = 0.1 * jax.random.normal(kb_, (Cout,), jnp.float32)
        gamma = 1.0 + 0.1 * jax.random.normal(kg_, (Cout,), jnp.float32)
        beta = 0.1 * jax.random.normal(kbt_, (Cout,), jnp.float32)
        x = jax.random.normal(kx_, (N, Cin, H, W), jnp.float32)

        out = jax.block_until_ready(conv_downsampling(x, w, b, gamma, beta))
        ref = _reference(x, w, b, gamma, beta)
        Ho = (H - 1) // 2 + 1
        Wo = (W - 1) // 2 + 1
        assert out.shape == (N, Cout, Ho, Wo), (out.shape, (N, Cout, Ho, Wo))
        # Tolerance covers bf16 MXU operands / bf16 conv intermediate vs pure-f32
        # reference; structural bugs would produce O(1) mismatches.
        err = float(jnp.max(jnp.abs(out - ref)))
        assert jnp.allclose(out, ref, rtol=3e-2, atol=3e-2), f"mismatch, max err {err}"

    run_case(2, 4, 16, 16, 8)         # primary small case (even dims, N >= 2)
    run_case(1, 3, 10, 14, 16, 1)     # odd spatial dims, N = 1 -> Cout-tiled grid
    print("KERNEL_OK")
</pallas_src>

<mosaic_0001>
module attributes {stable_mosaic.version = 11 : i64} {
  func.func @conv_stats_kernel(%arg0: i32, %arg1: i32, %arg2: memref<1x4x4x90xbf16, #tpu.memory_space<vmem>>, %arg3: memref<9x8x4xbf16, #tpu.memory_space<vmem>>, %arg4: memref<1x72xf32, #tpu.memory_space<vmem>>, %arg5: memref<1x8x72xbf16, #tpu.memory_space<vmem>>, %arg6: memref<1x8x1xf32, #tpu.memory_space<vmem>>, %arg7: memref<1x8x1xf32, #tpu.memory_space<vmem>>) attributes {dimension_semantics = [#tpu.dimension_semantics<parallel>, #tpu.dimension_semantics<parallel>], iteration_bounds = array<i64: 2, 1>, scalar_prefetch = 0 : i64, scratch_operands = 0 : i64, tpu.core_type = #tpu.core_type<tc>, window_params = [{transform_indices = @transform_0, window_bounds = array<i64: 1, 4, 4, 90>}, {transform_indices = @transform_1, window_bounds = array<i64: 9, 8, 4>}, {pipeline_mode = #tpu.pipeline_mode<synchronous>, transform_indices = @transform_2, window_bounds = array<i64: 1, 72>}, {transform_indices = @transform_3, window_bounds = array<i64: 1, 8, 72>}, {transform_indices = @transform_4, window_bounds = array<i64: 1, 8, 1>}, {transform_indices = @transform_5, window_bounds = array<i64: 1, 8, 1>}]} {
    %c0 = arith.constant 0 : index
    %c0_0 = arith.constant 0 : index
    %c0_1 = arith.constant 0 : index
    %0 = vector.load %arg3[%c0, %c0_0, %c0_1] : memref<9x8x4xbf16, #tpu.memory_space<vmem>>, vector<1x8x4xbf16>
    %1 = vector.shape_cast %0 : vector<1x8x4xbf16> to vector<8x4xbf16>
    %c0_2 = arith.constant 0 : index
    %c0_3 = arith.constant 0 : index
    %c0_4 = arith.constant 0 : index
    %c0_5 = arith.constant 0 : index
    %2 = vector.load %arg2[%c0_2, %c0_3, %c0_4, %c0_5] : memref<1x4x4x90xbf16, #tpu.memory_space<vmem>>, vector<1x1x4x72xbf16>
    %3 = vector.shape_cast %2 : vector<1x1x4x72xbf16> to vector<4x72xbf16>
    %cst = arith.constant dense<0.000000e+00> : vector<8x72xf32>
    %4 = tpu.matmul %1, %3, %cst {dimension_numbers = #tpu.dot_dimension_numbers<[1], [0], [0], [1], [0, 0, 1, 1], [], []>} : vector<8x4xbf16>, vector<4x72xbf16>, vector<8x72xf32> -> vector<8x72xf32>
    %c1 = arith.constant 1 : index
    %c0_6 = arith.constant 0 : index
    %c0_7 = arith.constant 0 : index
    %5 = vector.load %arg3[%c1, %c0_6, %c0_7] : memref<9x8x4xbf16, #tpu.memory_space<vmem>>, vector<1x8x4xbf16>
    %6 = vector.shape_cast %5 : vector<1x8x4xbf16> to vector<8x4xbf16>
    %c0_8 = arith.constant 0 : index
    %c1_9 = arith.constant 1 : index
    %c0_10 = arith.constant 0 : index
    %c0_11 = arith.constant 0 : index
    %7 = vector.load %arg2[%c0_8, %c1_9, %c0_10, %c0_11] : memref<1x4x4x90xbf16, #tpu.memory_space<vmem>>, vector<1x1x4x72xbf16>
    %8 = vector.shape_cast %7 : vector<1x1x4x72xbf16> to vector<4x72xbf16>
    %cst_12 = arith.constant dense<0.000000e+00> : vector<8x72xf32>
    %9 = tpu.matmul %6, %8, %cst_12 {dimension_numbers = #tpu.dot_dimension_numbers<[1], [0], [0], [1], [0, 0, 1, 1], [], []>} : vector<8x4xbf16>, vector<4x72xbf16>, vector<8x72xf32> -> vector<8x72xf32>
    %10 = arith.addf %4, %9 : vector<8x72xf32>
    %c2 = arith.constant 2 : index
    %c0_13 = arith.constant 0 : index
    %c0_14 = arith.constant 0 : index
    %11 = vector.load %arg3[%c2, %c0_13, %c0_14] : memref<9x8x4xbf16, #tpu.memory_space<vmem>>, vector<1x8x4xbf16>
    %12 = vector.shape_cast %11 : vector<1x8x4xbf16> to vector<8x4xbf16>
    %c0_15 = arith.constant 0 : index
    %c0_16 = arith.constant 0 : index
    %c0_17 = arith.constant 0 : index
    %c1_18 = arith.constant 1 : index
    %13 = vector.load %arg2[%c0_15, %c0_16, %c0_17, %c1_18] : memref<1x4x4x90xbf16, #tpu.memory_space<vmem>>, vector<1x1x4x72xbf16>
    %14 = vector.shape_cast %13 : vector<1x1x4x72xbf16> to vector<4x72xbf16>
    %cst_19 = arith.constant dense<0.000000e+00> : vector<8x72xf32>
    %15 = tpu.matmul %12, %14, %cst_19 {dimension_numbers = #tpu.dot_dimension_numbers<[1], [0], [0], [1], [0, 0, 1, 1], [], []>} : vector<8x4xbf16>, vector<4x72xbf16>, vector<8x72xf32> -> vector<8x72xf32>
    %16 = arith.addf %10, %15 : vector<8x72xf32>
    %c3 = arith.constant 3 : index
    %c0_20 = arith.constant 0 : index
    %c0_21 = arith.constant 0 : index
    %17 = vector.load %arg3[%c3, %c0_20, %c0_21] : memref<9x8x4xbf16, #tpu.memory_space<vmem>>, vector<1x8x4xbf16>
    %18 = vector.shape_cast %17 : vector<1x8x4xbf16> to vector<8x4xbf16>
    %c0_22 = arith.constant 0 : index
    %c2_23 = arith.constant 2 : index
    %c0_24 = arith.constant 0 : index
    %c0_25 = arith.constant 0 : index
    %19 = vector.load %arg2[%c0_22, %c2_23, %c0_24, %c0_25] : memref<1x4x4x90xbf16, #tpu.memory_space<vmem>>, vector<1x1x4x72xbf16>
    %20 = vector.shape_cast %19 : vector<1x1x4x72xbf16> to vector<4x72xbf16>
    %cst_26 = arith.constant dense<0.000000e+00> : vector<8x72xf32>
    %21 = tpu.matmul %18, %20, %cst_26 {dimension_numbers = #tpu.dot_dimension_numbers<[1], [0], [0], [1], [0, 0, 1, 1], [], []>} : vector<8x4xbf16>, vector<4x72xbf16>, vector<8x72xf32> -> vector<8x72xf32>
    %22 = arith.addf %16, %21 : vector<8x72xf32>
    %c4 = arith.constant 4 : index
    %c0_27 = arith.constant 0 : index
    %c0_28 = arith.constant 0 : index
    %23 = vector.load %arg3[%c4, %c0_27, %c0_28] : memref<9x8x4xbf16, #tpu.memory_space<vmem>>, vector<1x8x4xbf16>
    %24 = vector.shape_cast %23 : vector<1x8x4xbf16> to vector<8x4xbf16>
    %c0_29 = arith.constant 0 : index
    %c3_30 = arith.constant 3 : index
    %c0_31 = arith.constant 0 : index
    %c0_32 = arith.constant 0 : index
    %25 = vector.load %arg2[%c0_29, %c3_30, %c0_31, %c0_32] : memref<1x4x4x90xbf16, #tpu.memory_space<vmem>>, vector<1x1x4x72xbf16>
    %26 = vector.shape_cast %25 : vector<1x1x4x72xbf16> to vector<4x72xbf16>
    %cst_33 = arith.constant dense<0.000000e+00> : vector<8x72xf32>
    %27 = tpu.matmul %24, %26, %cst_33 {dimension_numbers = #tpu.dot_dimension_numbers<[1], [0], [0], [1], [0, 0, 1, 1], [], []>} : vector<8x4xbf16>, vector<4x72xbf16>, vector<8x72xf32> -> vector<8x72xf32>
    %28 = arith.addf %22, %27 : vector<8x72xf32>
    %c5 = arith.constant 5 : index
    %c0_34 = arith.constant 0 : index
    %c0_35 = arith.constant 0 : index
    %29 = vector.load %arg3[%c5, %c0_34, %c0_35] : memref<9x8x4xbf16, #tpu.memory_space<vmem>>, vector<1x8x4xbf16>
    %30 = vector.shape_cast %29 : vector<1x8x4xbf16> to vector<8x4xbf16>
    %c0_36 = arith.constant 0 : index
    %c2_37 = arith.constant 2 : index
    %c0_38 = arith.constant 0 : index
    %c1_39 = arith.constant 1 : index
    %31 = vector.load %arg2[%c0_36, %c2_37, %c0_38, %c1_39] : memref<1x4x4x90xbf16, #tpu.memory_space<vmem>>, vector<1x1x4x72xbf16>
    %32 = vector.shape_cast %31 : vector<1x1x4x72xbf16> to vector<4x72xbf16>
    %cst_40 = arith.constant dense<0.000000e+00> : vector<8x72xf32>
    %33 = tpu.matmul %30, %32, %cst_40 {dimension_numbers = #tpu.dot_dimension_numbers<[1], [0], [0], [1], [0, 0, 1, 1], [], []>} : vector<8x4xbf16>, vector<4x72xbf16>, vector<8x72xf32> -> vector<8x72xf32>
    %34 = arith.addf %28, %33 : vector<8x72xf32>
    %c6 = arith.constant 6 : index
    %c0_41 = arith.constant 0 : index
    %c0_42 = arith.constant 0 : index
    %35 = vector.load %arg3[%c6, %c0_41, %c0_42] : memref<9x8x4xbf16, #tpu.memory_space<vmem>>, vector<1x8x4xbf16>
    %36 = vector.shape_cast %35 : vector<1x8x4xbf16> to vector<8x4xbf16>
    %c0_43 = arith.constant 0 : index
    %c0_44 = arith.constant 0 : index
    %c0_45 = arith.constant 0 : index
    %c9 = arith.constant 9 : index
    %37 = vector.load %arg2[%c0_43, %c0_44, %c0_45, %c9] : memref<1x4x4x90xbf16, #tpu.memory_space<vmem>>, vector<1x1x4x72xbf16>
    %38 = vector.shape_cast %37 : vector<1x1x4x72xbf16> to vector<4x72xbf16>
    %cst_46 = arith.constant dense<0.000000e+00> : vector<8x72xf32>
    %39 = tpu.matmul %36, %38, %cst_46 {dimension_numbers = #tpu.dot_dimension_numbers<[1], [0], [0], [1], [0, 0, 1, 1], [], []>} : vector<8x4xbf16>, vector<4x72xbf16>, vector<8x72xf32> -> vector<8x72xf32>
    %40 = arith.addf %34, %39 : vector<8x72xf32>
    %c7 = arith.constant 7 : index
    %c0_47 = arith.constant 0 : index
    %c0_48 = arith.constant 0 : index
    %41 = vector.load %arg3[%c7, %c0_47, %c0_48] : memref<9x8x4xbf16, #tpu.memory_space<vmem>>, vector<1x8x4xbf16>
    %42 = vector.shape_cast %41 : vector<1x8x4xbf16> to vector<8x4xbf16>
    %c0_49 = arith.constant 0 : index
    %c1_50 = arith.constant 1 : index
    %c0_51 = arith.constant 0 : index
    %c9_52 = arith.constant 9 : index
    %43 = vector.load %arg2[%c0_49, %c1_50, %c0_51, %c9_52] : memref<1x4x4x90xbf16, #tpu.memory_space<vmem>>, vector<1x1x4x72xbf16>
    %44 = vector.shape_cast %43 : vector<1x1x4x72xbf16> to vector<4x72xbf16>
    %cst_53 = arith.constant dense<0.000000e+00> : vector<8x72xf32>
    %45 = tpu.matmul %42, %44, %cst_53 {dimension_numbers = #tpu.dot_dimension_numbers<[1], [0], [0], [1], [0, 0, 1, 1], [], []>} : vector<8x4xbf16>, vector<4x72xbf16>, vector<8x72xf32> -> vector<8x72xf32>
    %46 = arith.addf %40, %45 : vector<8x72xf32>
    %c8 = arith.constant 8 : index
    %c0_54 = arith.constant 0 : index
    %c0_55 = arith.constant 0 : index
    %47 = vector.load %arg3[%c8, %c0_54, %c0_55] : memref<9x8x4xbf16, #tpu.memory_space<vmem>>, vector<1x8x4xbf16>
    %48 = vector.shape_cast %47 : vector<1x8x4xbf16> to vector<8x4xbf16>
    %c0_56 = arith.constant 0 : index
    %c0_57 = arith.constant 0 : index
    %c0_58 = arith.constant 0 : index
    %c10 = arith.constant 10 : index
    %49 = vector.load %arg2[%c0_56, %c0_57, %c0_58, %c10] : memref<1x4x4x90xbf16, #tpu.memory_space<vmem>>, vector<1x1x4x72xbf16>
    %50 = vector.shape_cast %49 : vector<1x1x4x72xbf16> to vector<4x72xbf16>
    %cst_59 = arith.constant dense<0.000000e+00> : vector<8x72xf32>
    %51 = tpu.matmul %48, %50, %cst_59 {dimension_numbers = #tpu.dot_dimension_numbers<[1], [0], [0], [1], [0, 0, 1, 1], [], []>} : vector<8x4xbf16>, vector<4x72xbf16>, vector<8x72xf32> -> vector<8x72xf32>
    %52 = arith.addf %46, %51 : vector<8x72xf32>
    %53 = arith.truncf %52 : vector<8x72xf32> to vector<8x72xbf16>
    %c0_60 = arith.constant 0 : index
    %c0_61 = arith.constant 0 : index
    %c0_62 = arith.constant 0 : index
    %54 = vector.load %arg5[%c0_60, %c0_61, %c0_62] : memref<1x8x72xbf16, #tpu.memory_space<vmem>>, vector<1x8x72xbf16>
    %55 = vector.shape_cast %54 : vector<1x8x72xbf16> to vector<8x72xbf16>
    %56 = vector.shape_cast %53 : vector<8x72xbf16> to vector<1x8x72xbf16>
    tpu.vector_store %arg5[%c0_60, %c0_61, %c0_62], %56 {strides = array<i32>} : memref<1x8x72xbf16, #tpu.memory_space<vmem>>, vector<1x8x72xbf16>,
    %c0_63 = arith.constant 0 : index
    %c0_64 = arith.constant 0 : index
    %57 = vector.load %arg4[%c0_63, %c0_64] : memref<1x72xf32, #tpu.memory_space<vmem>>, vector<1x72xf32>
    %58 = vector.broadcast %57 : vector<1x72xf32> to vector<8x72xf32>
    %59 = arith.mulf %52, %58 : vector<8x72xf32>
    %cst_65 = arith.constant dense<0.000000e+00> : vector<8xf32>
    %60 = vector.multi_reduction <add>, %59, %cst_65 [1] : vector<8x72xf32> to vector<8xf32>
    %61 = vector.shape_cast %60 : vector<8xf32> to vector<8x1xf32>
    %c0_66 = arith.constant 0 : index
    %c0_67 = arith.constant 0 : index
    %c0_68 = arith.constant 0 : index
    %62 = vector.load %arg6[%c0_66, %c0_67, %c0_68] : memref<1x8x1xf32, #tpu.memory_space<vmem>>, vector<1x8x1xf32>
    %63 = vector.shape_cast %62 : vector<1x8x1xf32> to vector<8x1xf32>
    %64 = vector.shape_cast %61 : vector<8x1xf32> to vector<1x8x1xf32>
    tpu.vector_store %arg6[%c0_66, %c0_67, %c0_68], %64 {strides = array<i32>} : memref<1x8x1xf32, #tpu.memory_space<vmem>>, vector<1x8x1xf32>,
    %65 = arith.mulf %59, %52 : vector<8x72xf32>
    %cst_69 = arith.constant dense<0.000000e+00> : vector<8xf32>
    %66 = vector.multi_reduction <add>, %65, %cst_69 [1] : vector<8x72xf32> to vector<8xf32>
    %67 = vector.shape_cast %66 : vector<8xf32> to vector<8x1xf32>
    %c0_70 = arith.constant 0 : index
    %c0_71 = arith.constant 0 : index
    %c0_72 = arith.constant 0 : index
    %68 = vector.load %arg7[%c0_70, %c0_71, %c0_72] : memref<1x8x1xf32, #tpu.memory_space<vmem>>, vector<1x8x1xf32>
    %69 = vector.shape_cast %68 : vector<1x8x1xf32> to vector<8x1xf32>
    %70 = vector.shape_cast %67 : vector<8x1xf32> to vector<1x8x1xf32>
    tpu.vector_store %arg7[%c0_70, %c0_71, %c0_72], %70 {strides = array<i32>} : memref<1x8x1xf32, #tpu.memory_space<vmem>>, vector<1x8x1xf32>,
    return
  }
  func.func @transform_0(%arg0: i32, %arg1: i32) -> (i32, i32, i32, i32) {
    %c0_i32 = arith.constant 0 : i32
    %c0_i32_0 = arith.constant 0 : i32
    %c0_i32_1 = arith.constant 0 : i32
    %c0_i32_2 = arith.constant 0 : i32
    return %arg0, %c0_i32, %c0_i32_0, %c0_i32_1 : i32, i32, i32, i32
  }
  func.func @transform_1(%arg0: i32, %arg1: i32) -> (i32, i32, i32) {
    %c0_i32 = arith.constant 0 : i32
    %c0_i32_0 = arith.constant 0 : i32
    %c0_i32_1 = arith.constant 0 : i32
    return %c0_i32, %arg1, %c0_i32_0 : i32, i32, i32
  }
  func.func @transform_2(%arg0: i32, %arg1: i32) -> (i32, i32) {
    %c0_i32 = arith.constant 0 : i32
    %c0_i32_0 = arith.constant 0 : i32
    %c0_i32_1 = arith.constant 0 : i32
    return %c0_i32, %c0_i32_0 : i32, i32
  }
  func.func @transform_3(%arg0: i32, %arg1: i32) -> (i32, i32, i32) {
    %c0_i32 = arith.constant 0 : i32
    %c0_i32_0 = arith.constant 0 : i32
    return %arg0, %arg1, %c0_i32 : i32, i32, i32
  }
  func.func @transform_4(%arg0: i32, %arg1: i32) -> (i32, i32, i32) {
    %c0_i32 = arith.constant 0 : i32
    %c0_i32_0 = arith.constant 0 : i32
    return %arg0, %arg1, %c0_i32 : i32, i32, i32
  }
  func.func @transform_5(%arg0: i32, %arg1: i32) -> (i32, i32, i32) {
    %c0_i32 = arith.constant 0 : i32
    %c0_i32_0 = arith.constant 0 : i32
    return %arg0, %arg1, %c0_i32 : i32, i32, i32
  }
}

</mosaic_0001>

<llo_original>
// kernel: tpu_custom_call.1
$region0: #{tpu_custom_call.1}
  #allocation0 [shape = 'u32[]', space=smem, size = 0x4, offset = 0x4, fixed_abs, tag = 'smem constant byte address 0x4 - core index']
  #allocation1 [shape = 'u32[144,128]{1,0:T(1,128)}', space=vmem, size = 0x12000, scoped, tag = 'internal scratch']
  %s0 = inlined_call_operand.vmem [shape: bf16[2,4,4,90], index: 0, kind: input, shape index: {}]
  %s1 = inlined_call_operand.vmem [shape: bf16[9,8,4], index: 1, kind: input, shape index: {}]
  %s2 = inlined_call_operand.vmem [shape: f32[1,72], index: 2, kind: input, shape index: {}]
  %s3 = inlined_call_operand.hbm [shape: bf16[2,8,72], index: 3, kind: output, shape index: {0}]
  %s4 = inlined_call_operand.vmem [shape: f32[2,8,1], index: 4, kind: output, shape index: {1}]
  %s5 = inlined_call_operand.vmem [shape: f32[2,8,1], index: 5, kind: output, shape index: {2}]
  %6 = xla_tuple %s3, %s4, %s5
  %s7 = sld [smem:[#allocation0]]
  $region61: #{tpu_custom_call.1} parent=0
    _
  %s9 = ssub.s32 1, %s7
  %s10 = scalar_select 0, %s9, %s7
  $region1: #{tpu_custom_call.1} parent=0
    #allocation2 [shape = 'u8[4096]{0}', space=vmem, size = 0x1000, scoped, tag = 'output window, operand 0']
    #allocation3 [shape = 's32[2]{0}', space=sflag, size = 0x8, scoped, tag = 'scoped memory for tpu_custom_call.1']
    %11 = vsyncpa [#allocation3], 0
    %s12 = scalar_lea.sflag [#allocation3], 1
    %13 = vsyncpa %s12, 0
    loop: start=0, step=1, limit=4
    $region2: #{tpu_custom_call.1} parent=1 // loop_pre_header
      _
    $region3: #{tpu_custom_call.1} parent=1 // loop_header
      %s15 = sphi 0, %s19
      %p16 = scmp.ge.s32.totalorder %s15, 4
      %s22 = sphi 0, %s34
      %s23 = sphi 0, %s30
      %s24 = sphi 0, %s22
      %s25 = sphi 0, %s23
      %s26 = sphi 0, %s24
      %s27 = sphi 0, %s25
      %s37 = sphi 0, %s39
      %s40 = sphi 0, %s37
      %s41 = sphi 0, %s40
      %s57 = sphi 0, %s41
      %s63 = sphi 0, %s65
      %s66 = sphi 0, %s63
      %s67 = sphi 0, %s66
      %s83 = sphi 0, %s67
      %s87 = sphi 0, %s87
      %s89 = sphi 0, %s87
      %s90 = sphi 0, %s89
      %s104 = sphi 0, %s90
      %s112 = sphi 0, %s114
      %s115 = sphi 0, %s112
      %s116 = sphi 0, %s115
      %s132 = sphi 0, %s116
      %s140 = sphi 0, %s142
      %s143 = sphi 0, %s140
      %s144 = sphi 0, %s143
      %s160 = sphi 0, %s144
      %s168 = sphi 0, %s170
      %s171 = sphi 0, %s168
      %s172 = sphi 0, %s171
      %s188 = sphi 0, %s172
    $region4: #{tpu_custom_call.1} parent=1 // loop_header_branch
      %18 = sbr.rel (%p16) target = $region8
    $region5: #{tpu_custom_call.1} parent=1 // loop_body
      %s20 = ssub.s32 %s15, 1
      %s21 = ssub.s32 %s15, 2
      %s28 = sadd.s32 1, %s23
      %p29 = scmp.ge.s32.totalorder %s28, 1
      %s30 = scalar_select %p29, 0, %s28
      %s31 = sadd.s32 1, %s22
      %s32 = scalar_select %p29, %s31, %s22
      %p33 = scmp.ge.s32.totalorder %s32, 2
      %s34 = scalar_select %p33, 0, %s32
      %s35 = ssub.s32 %s22, %s34
      %p36 = scmp.eq.s32.totalorder %s35, 0
      %s38 = sadd.s32 %s37, 1
      %s39 = scalar_select %p36, %s37, %s38
      %p42 = pneg %p36
      %p43 = scmp.eq.s32.totalorder %s15, 1
      %p44 = por %p42, %p43
      %p45 = scmp.ne.s32.totalorder %s37, %s40
      %p46 = scmp.eq.s32.totalorder %s15, 0
      %p47 = por %p45, %p46
      %p48 = scmp.ne.s32.totalorder %s37, %s40
      %p49 = scmp.eq.s32.totalorder %s20, 1
      %p50 = por %p48, %p49
      %p51 = scmp.ne.s32.totalorder %s40, %s41
      %p52 = scmp.eq.s32.totalorder %s20, 0
      %p53 = por %p51, %p52
      %p54 = scmp.ne.s32.totalorder %s40, %s41
      %p55 = scmp.eq.s32.totalorder %s21, 1
      %p56 = por %p54, %p55
      %p58 = scmp.ne.s32.totalorder %s41, %s57
      %p59 = scmp.eq.s32.totalorder %s21, 0
      %p60 = por %p58, %p59
      %s61 = ssub.s32 %s23, %s30
      %p62 = scmp.eq.s32.totalorder %s61, 0
      %s64 = sadd.s32 %s63, 1
      %s65 = scalar_select %p62, %s63, %s64
      %p68 = pneg %p62
      %p69 = scmp.eq.s32.totalorder %s15, 1
      %p70 = por %p68, %p69
      %p71 = scmp.ne.s32.totalorder %s63, %s66
      %p72 = scmp.eq.s32.totalorder %s15, 0
      %p73 = por %p71, %p72
      %p74 = scmp.ne.s32.totalorder %s63, %s66
      %p75 = scmp.eq.s32.totalorder %s20, 1
      %p76 = por %p74, %p75
      %p77 = scmp.ne.s32.totalorder %s66, %s67
      %p78 = scmp.eq.s32.totalorder %s20, 0
      %p79 = por %p77, %p78
      %p80 = scmp.ne.s32.totalorder %s66, %s67
      %p81 = scmp.eq.s32.totalorder %s21, 1
      %p82 = por %p80, %p81
      %p84 = scmp.ne.s32.totalorder %s67, %s83
      %p85 = scmp.eq.s32.totalorder %s21, 0
      %p86 = por %p84, %p85
      %s88 = sadd.s32 %s87, 1
      %p91 = scmp.eq.s32.totalorder %s15, 1
      %p92 = scmp.ne.s32.totalorder %s87, %s89
      %p93 = scmp.eq.s32.totalorder %s15, 0
      %p94 = por %p92, %p93
      %p95 = scmp.ne.s32.totalorder %s87, %s89
      %p96 = scmp.eq.s32.totalorder %s20, 1
      %p97 = por %p95, %p96
      %p98 = scmp.ne.s32.totalorder %s89, %s90
      %p99 = scmp.eq.s32.totalorder %s20, 0
      %p100 = por %p98, %p99
      %p101 = scmp.ne.s32.totalorder %s89, %s90
      %p102 = scmp.eq.s32.totalorder %s21, 1
      %p103 = por %p101, %p102
      %p105 = scmp.ne.s32.totalorder %s90, %s104
      %p106 = scmp.eq.s32.totalorder %s21, 0
      %p107 = por %p105, %p106
      %s108 = ssub.s32 %s22, %s34
      %s109 = ssub.s32 %s23, %s30
      %s110 = sor.u32 %s108, %s109
      %p111 = scmp.eq.s32.totalorder %s110, 0
      %s113 = sadd.s32 %s112, 1
      %s114 = scalar_select %p111, %s112, %s113
      %p117 = pneg %p111
      %p118 = scmp.eq.s32.totalorder %s15, 1
      %p119 = por %p117, %p118
      %p120 = scmp.ne.s32.totalorder %s112, %s115
      %p121 = scmp.eq.s32.totalorder %s15, 0
      %p122 = por %p120, %p121
      %p123 = scmp.ne.s32.totalorder %s112, %s115
      %p124 = scmp.eq.s32.totalorder %s20, 1
      %p125 = por %p123, %p124
      %p126 = scmp.ne.s32.totalorder %s115, %s116
      %p127 = scmp.eq.s32.totalorder %s20, 0
      %p128 = por %p126, %p127
      %p129 = scmp.ne.s32.totalorder %s115, %s116
      %p130 = scmp.eq.s32.totalorder %s21, 1
      %p131 = por %p129, %p130
      %p133 = scmp.ne.s32.totalorder %s116, %s132
      %p134 = scmp.eq.s32.totalorder %s21, 0
      %p135 = por %p133, %p134
      %s136 = ssub.s32 %s22, %s34
      %s137 = ssub.s32 %s23, %s30
      %s138 = sor.u32 %s136, %s137
      %p139 = scmp.eq.s32.totalorder %s138, 0
      %s141 = sadd.s32 %s140, 1
      %s142 = scalar_select %p139, %s140, %s141
      %p145 = pneg %p139
      %p146 = scmp.eq.s32.totalorder %s15, 1
      %p147 = por %p145, %p146
      %p148 = scmp.ne.s32.totalorder %s140, %s143
      %p149 = scmp.eq.s32.totalorder %s15, 0
      %p150 = por %p148, %p149
      %p151 = scmp.ne.s32.totalorder %s140, %s143
      %p152 = scmp.eq.s32.totalorder %s20, 1
      %p153 = por %p151, %p152
      %p154 = scmp.ne.s32.totalorder %s143, %s144
      %p155 = scmp.eq.s32.totalorder %s20, 0
      %p156 = por %p154, %p155
      %p157 = scmp.ne.s32.totalorder %s143, %s144
      %p158 = scmp.eq.s32.totalorder %s21, 1
      %p159 = por %p157, %p158
      %p161 = scmp.ne.s32.totalorder %s144, %s160
      %p162 = scmp.eq.s32.totalorder %s21, 0
      %p163 = por %p161, %p162
      %s164 = ssub.s32 %s22, %s34
      %s165 = ssub.s32 %s23, %s30
      %s166 = sor.u32 %s164, %s165
      %p167 = scmp.eq.s32.totalorder %s166, 0
      %s169 = sadd.s32 %s168, 1
      %s170 = scalar_select %p167, %s168, %s169
      %p173 = pneg %p167
      %p174 = scmp.eq.s32.totalorder %s15, 1
      %p175 = por %p173, %p174
      %p176 = scmp.ne.s32.totalorder %s168, %s171
      %p177 = scmp.eq.s32.totalorder %s15, 0
      %p178 = por %p176, %p177
      %p179 = scmp.ne.s32.totalorder %s168, %s171
      %p180 = scmp.eq.s32.totalorder %s20, 1
      %p181 = por %p179, %p180
      %p182 = scmp.ne.s32.totalorder %s171, %s172
      %p183 = scmp.eq.s32.totalorder %s20, 0
      %p184 = por %p182, %p183
      %p185 = scmp.ne.s32.totalorder %s171, %s172
      %p186 = scmp.eq.s32.totalorder %s21, 1
      %p187 = por %p185, %p186
      %p189 = scmp.ne.s32.totalorder %s172, %s188
      %p190 = scmp.eq.s32.totalorder %s21, 0
      %p191 = por %p189, %p190
      %p192 = scmp.le.s32.totalorder 1, %s15
      %p193 = scmp.lt.s32.totalorder %s15, 3
      %p194 = pnand %p192, %p193
      %p195 = pneg %p194
      // Predicated region
      $region9: #{tpu_custom_call.1} parent=5 // pred_check
        _
      $region10: #{tpu_custom_call.1} parent=5 // pred_check_branch
        %197 = sbr.rel (%p194) target = $region12
      $region11: #{tpu_custom_call.1} parent=5 // pred_region
        %s198 = ssub.s32 %s15, 1
        // Predicated region
        $region13: #{tpu_custom_call.1} parent=11 // pred_check
          %p199 = pneg %p79
        $region14: #{tpu_custom_call.1} parent=11 // pred_check_branch
          %201 = sbr.rel (%p199) target = $region16
        $region15: #{tpu_custom_call.1} parent=11 // pred_region
          %p202 = scmp.lt.s32.totalorder %s25, 0
          %s203 = scalar_select %p202, %s25, 0
          %s204 = smul.addr %s203, 4
          %s205 = scalar_lea.vmem %s1, %s204
        $region16: #{tpu_custom_call.1} parent=11 // pred_fallthru
          _
        // Predicated region
        $region17: #{tpu_custom_call.1} parent=11 // pred_check
          %p206 = pneg %p100
        $region18: #{tpu_custom_call.1} parent=11 // pred_check_branch
          %208 = sbr.rel (%p206) target = $region20
        $region19: #{tpu_custom_call.1} parent=11 // pred_region
          _
        $region20: #{tpu_custom_call.1} parent=11 // pred_fallthru
          _
      $region12: #{tpu_custom_call.1} parent=5 // pred_fallthru
        _
      %p209 = scmp.lt.s32.totalorder %s15, 2
      // Predicated region
      $region21: #{tpu_custom_call.1} parent=5 // pred_check
        %p210 = pneg %p209
      $region22: #{tpu_custom_call.1} parent=5 // pred_check_branch
        %212 = sbr.rel (%p210) target = $region24
      $region23: #{tpu_custom_call.1} parent=5 // pred_region
        // Predicated region
        $region25: #{tpu_custom_call.1} parent=23 // pred_check
          %p213 = pneg %p47
        $region26: #{tpu_custom_call.1} parent=23 // pred_check_branch
          %215 = sbr.rel (%p213) target = $region28
        $region27: #{tpu_custom_call.1} parent=23 // pred_region
          %p216 = scmp.lt.s32.totalorder %s22, 1
          %s217 = scalar_select %p216, %s22, 1
          %s218 = smul.addr %s217, 4
          %s219 = smul.addr %s218, 2
          %s220 = scalar_lea.vmem %s0, %s219
        $region28: #{tpu_custom_call.1} parent=23 // pred_fallthru
          _
      $region24: #{tpu_custom_call.1} parent=5 // pred_fallthru
        _
      %p221 = scmp.le.s32.totalorder 1, %s15
      %p222 = scmp.lt.s32.totalorder %s15, 3
      %p223 = pnand %p221, %p222
      %p224 = pneg %p223
      // Predicated region
      $region29: #{tpu_custom_call.1} parent=5 // pred_check
        _
      $region30: #{tpu_custom_call.1} parent=5 // pred_check_branch
        %226 = sbr.rel (%p223) target = $region32
      $region31: #{tpu_custom_call.1} parent=5 // pred_region
        %s227 = ssub.s32 %s15, 1
        %p228 = scmp.lt.s32.totalorder %s24, 1
        %s229 = scalar_select %p228, %s24, 1
        %s230 = smul.addr %s229, 4
        %s231 = smul.addr %s230, 2
        %s232 = scalar_lea.vmem %s0, %s231
        %p233 = pneg %p53
        %p234 = pneg %p50
        %p235 = scmp.lt.s32.totalorder %s25, 0
        %s236 = scalar_select %p235, %s25, 0
        %s237 = smul.addr %s236, 4
        %s238 = scalar_lea.vmem %s1, %s237
        %p239 = pneg %p79
        %p240 = pneg %p76
        %p241 = pneg %p100
        %p242 = pneg %p97
        %p243 = pneg %p128
        %p244 = pneg %p125
        %s245 = sand.u32 %s115, 1
        %s246 = scalar_lea.sflag [#allocation3], %s245
        %s247 = sand.u32 %s115, 1
        %s248 = smul.addr %s247, 4
        %s249 = scalar_lea.vmem [#allocation2], %s248
        %p250 = pneg %p156
        %p251 = pneg %p153
        %p252 = scmp.lt.s32.totalorder %s24, 1
        %s253 = scalar_select %p252, %s24, 1
        %p254 = scmp.lt.s32.totalorder %s25, 0
        %s255 = scalar_select %p254, %s25, 0
        %s256 = sadd.s32 %s255, %s253
        %s257 = smul.addr %s256, 8
        %s258 = scalar_lea.vmem %s4, %s257
        %p259 = pneg %p184
        %p260 = pneg %p181
        %p261 = scmp.lt.s32.totalorder %s24, 1
        %s262 = scalar_select %p261, %s24, 1
        %p263 = scmp.lt.s32.totalorder %s25, 0
        %s264 = scalar_select %p263, %s25, 0
        %s265 = sadd.s32 %s264, %s262
        %s266 = smul.addr %s265, 8
        %s267 = scalar_lea.vmem %s5, %s266
        %p268 = scmp.lt.s32.totalorder %s24, 1
        %s269 = scalar_select %p268, %s24, 1
        %s270 = smul.addr %s269, 4
        %s271 = smul.addr %s270, 2
        %s272 = scalar_lea.vmem %s0, %s271
        %p273 = scmp.lt.s32.totalorder %s25, 0
        %s274 = scalar_select %p273, %s25, 0
        %s275 = smul.addr %s274, 4
        %s276 = scalar_lea.vmem %s1, %s275
        %p277 = scmp.lt.s32.totalorder %s24, 1
        %s278 = scalar_select %p277, %s24, 1
        %p279 = scmp.lt.s32.totalorder %s25, 0
        %s280 = scalar_select %p279, %s25, 0
        %s281 = sadd.s32 %s280, %s278
        %s282 = smul.addr %s281, 8
        %s283 = scalar_lea.vmem %s4, %s282
        %p284 = scmp.lt.s32.totalorder %s24, 1
        %s285 = scalar_select %p284, %s24, 1
        %p286 = scmp.lt.s32.totalorder %s25, 0
        %s287 = scalar_select %p286, %s25, 0
        %s288 = sadd.s32 %s287, %s285
        %s289 = smul.addr %s288, 8
        %s290 = scalar_lea.vmem %s5, %s289
        %v292 = vld [vmem:[%s276] sm:$0xf]
        %v293 = vld [vmem:[%s272] sm:$0x3]
        %s294 = scalar_lea.vmem %s276, 4
        %v295 = vld [vmem:[%s294] sm:$0xf]
        %s296 = scalar_lea.vmem %s272, 2
        %v297 = vld [vmem:[%s296] sm:$0x3]
        %vm298 = vcmask 31744
        %v300 = vsel %vm298, %v295, 0
        %vm302 = vcmask 1041408
        %v304 = vsel %vm302, %v297, 0
        %306 = vmatprep.subr.bf16.mxu0 0
        %307 = vmatpush1.bf16.msra.mxu0 %v304
        %308 = vmatprep.subr.bf16.mxu0 0
        %309 = vmatpush1.bf16.msra.mxu0 0
        %310 = vmatprep.subr.bf16.mxu0 0
        %311 = vmatpush1.bf16.msra.mxu0 0
        %312 = vmatprep.subr.bf16.mxu0 0
        %313 = vmatpush1.bf16.msra.mxu0 0
        %314 = vmatprep.subr.bf16.mxu0 0
        %315 = vmatpush1.bf16.msra.mxu0 0
        %316 = vmatprep.subr.bf16.mxu0 0
        %317 = vmatpush1.bf16.msra.mxu0 0
        %318 = vmatprep.subr.bf16.mxu0 0
        %319 = vmatpush1.bf16.msra.mxu0 0
        %320 = vmatprep.subr.bf16.mxu0 0
        %321 = vmatpush1.bf16.msra.mxu0 0
        %322 = vmatprep.subr.bf16.mxu0 0
        %323 = vmatpush1.bf16.msra.mxu0 0
        %324 = vmatprep.subr.bf16.mxu0 0
        %325 = vmatpush1.bf16.msra.mxu0 0
        %326 = vmatprep.subr.bf16.mxu0 0
        %327 = vmatpush1.bf16.msra.mxu0 0
        %328 = vmatprep.subr.bf16.mxu0 0
        %329 = vmatpush1.bf16.msra.mxu0 0
        %330 = vmatprep.subr.bf16.mxu0 0
        %331 = vmatpush1.bf16.msra.mxu0 0
        %332 = vmatprep.subr.bf16.mxu0 0
        %333 = vmatpush1.bf16.msra.mxu0 0
        %334 = vmatprep.subr.bf16.mxu0 0
        %335 = vmatpush1.bf16.msra.mxu0 0
        %336 = vmatprep.subr.bf16.mxu0 0
        %337 = vmatpush1.bf16.msra.mxu0 0
        %338 = vmatprep.mubr.bf16.mxu0 0
        %339 = vmatmul.mubr.bf16.gmra.mrb[0].mxu0 %v300
        %v340 = vpop.f32.mrb[0].mxu0
        %v341 = vadd.f32 0.0, %v340
        %v342 = vpop.f32.mrb[0].mxu0
        %v343 = vpop.f32.mrb[0].mxu0
        %v344 = vpop.f32.mrb[0].mxu0
        %345 = vdwg.mxu0
        %v347 = vsel %vm298, %v292, 0
        %v350 = vsel %vm302, %v293, 0
        %352 = vmatprep.subr.bf16.mxu0 0
        %353 = vmatpush1.bf16.msra.mxu0 %v350
        %354 = vmatprep.subr.bf16.mxu0 0
        %355 = vmatpush1.bf16.msra.mxu0 0
        %356 = vmatprep.subr.bf16.mxu0 0
        %357 = vmatpush1.bf16.msra.mxu0 0
        %358 = vmatprep.subr.bf16.mxu0 0
        %359 = vmatpush1.bf16.msra.mxu0 0
        %360 = vmatprep.subr.bf16.mxu0 0
        %361 = vmatpush1.bf16.msra.mxu0 0
        %362 = vmatprep.subr.bf16.mxu0 0
        %363 = vmatpush1.bf16.msra.mxu0 0
        %364 = vmatprep.subr.bf16.mxu0 0
        %365 = vmatpush1.bf16.msra.mxu0 0
        %366 = vmatprep.subr.bf16.mxu0 0
        %367 = vmatpush1.bf16.msra.mxu0 0
        %368 = vmatprep.subr.bf16.mxu0 0
        %369 = vmatpush1.bf16.msra.mxu0 0
        %370 = vmatprep.subr.bf16.mxu0 0
        %371 = vmatpush1.bf16.msra.mxu0 0
        %372 = vmatprep.subr.bf16.mxu0 0
        %373 = vmatpush1.bf16.msra.mxu0 0
        %374 = vmatprep.subr.bf16.mxu0 0
        %375 = vmatpush1.bf16.msra.mxu0 0
        %376 = vmatprep.subr.bf16.mxu0 0
        %377 = vmatpush1.bf16.msra.mxu0 0
        %378 = vmatprep.subr.bf16.mxu0 0
        %379 = vmatpush1.bf16.msra.mxu0 0
        %380 = vmatprep.subr.bf16.mxu0 0
        %381 = vmatpush1.bf16.msra.mxu0 0
        %382 = vmatprep.subr.bf16.mxu0 0
        %383 = vmatpush1.bf16.msra.mxu0 0
        %384 = vmatprep.mubr.bf16.mxu0 0
        %385 = vmatmul.mubr.bf16.gmra.mrb[0].mxu0 %v347
        %v386 = vpop.f32.mrb[0].mxu0
        %v387 = vadd.f32 %v341, %v386
        %v388 = vpop.f32.mrb[0].mxu0
        %v389 = vpop.f32.mrb[0].mxu0
        %v390 = vpop.f32.mrb[0].mxu0
        %391 = vdwg.mxu0
        %s392 = scalar_lea.vmem %s276, 8
        %v393 = vld [vmem:[%s392] sm:$0xf]
        %v396 = vunpack.c.l.s4 1983009808
        %v397 = vunpack.c.0.s8 %v396
        %v398 = vlaneseq
        %v399 = vshrl.u32 %v398, 7
        %v400 = vsub.s32 %v397, %v399
        %v401 = vrot.slane %v293, %v400
        %402 = vrot.lane.b32.xlu0 %v401, 127
        %v403 = vpop.permute.xlu0 %402
        %v405 = vsel %vm298, %v393, 0
        %v408 = vsel %vm302, %v403, 0
        %410 = vmatprep.subr.bf16.mxu0 0
        %411 = vmatpush1.bf16.msra.mxu0 %v408
        %412 = vmatprep.subr.bf16.mxu0 0
        %413 = vmatpush1.bf16.msra.mxu0 0
        %414 = vmatprep.subr.bf16.mxu0 0
        %415 = vmatpush1.bf16.msra.mxu0 0
        %416 = vmatprep.subr.bf16.mxu0 0
        %417 = vmatpush1.bf16.msra.mxu0 0
        %418 = vmatprep.subr.bf16.mxu0 0
        %419 = vmatpush1.bf16.msra.mxu0 0
        %420 = vmatprep.subr.bf16.mxu0 0
        %421 = vmatpush1.bf16.msra.mxu0 0
        %422 = vmatprep.subr.bf16.mxu0 0
        %423 = vmatpush1.bf16.msra.mxu0 0
        %424 = vmatprep.subr.bf16.mxu0 0
        %425 = vmatpush1.bf16.msra.mxu0 0
        %426 = vmatprep.subr.bf16.mxu0 0
        %427 = vmatpush1.bf16.msra.mxu0 0
        %428 = vmatprep.subr.bf16.mxu0 0
        %429 = vmatpush1.bf16.msra.mxu0 0
        %430 = vmatprep.subr.bf16.mxu0 0
        %431 = vmatpush1.bf16.msra.mxu0 0
        %432 = vmatprep.subr.bf16.mxu0 0
        %433 = vmatpush1.bf16.msra.mxu0 0
        %434 = vmatprep.subr.bf16.mxu0 0
        %435 = vmatpush1.bf16.msra.mxu0 0
        %436 = vmatprep.subr.bf16.mxu0 0
        %437 = vmatpush1.bf16.msra.mxu0 0
        %438 = vmatprep.subr.bf16.mxu0 0
        %439 = vmatpush1.bf16.msra.mxu0 0
        %440 = vmatprep.subr.bf16.mxu0 0
        %441 = vmatpush1.bf16.msra.mxu0 0
        %442 = vmatprep.mubr.bf16.mxu0 0
        %443 = vmatmul.mubr.bf16.gmra.mrb[0].mxu0 %v405
        %v444 = vpop.f32.mrb[0].mxu0
        %v445 = vadd.f32 0.0, %v444
        %v446 = vpop.f32.mrb[0].mxu0
        %v447 = vpop.f32.mrb[0].mxu0
        %v448 = vpop.f32.mrb[0].mxu0
        %449 = vdwg.mxu0
        %v450 = vadd.f32 %v387, %v445
        %s451 = scalar_lea.vmem %s276, 12
        %v452 = vld [vmem:[%s451] sm:$0xf]
        %s453 = scalar_lea.vmem %s272, 4
        %v454 = vld [vmem:[%s453] sm:$0x3]
        %v456 = vsel %vm298, %v452, 0
        %v459 = vsel %vm302, %v454, 0
        %461 = vmatprep.subr.bf16.mxu0 0
        %462 = vmatpush1.bf16.msra.mxu0 %v459
        %463 = vmatprep.subr.bf16.mxu0 0
        %464 = vmatpush1.bf16.msra.mxu0 0
        %465 = vmatprep.subr.bf16.mxu0 0
        %466 = vmatpush1.bf16.msra.mxu0 0
        %467 = vmatprep.subr.bf16.mxu0 0
        %468 = vmatpush1.bf16.msra.mxu0 0
        %469 = vmatprep.subr.bf16.mxu0 0
        %470 = vmatpush1.bf16.msra.mxu0 0
        %471 = vmatprep.subr.bf16.mxu0 0
        %472 = vmatpush1.bf16.msra.mxu0 0
        %473 = vmatprep.subr.bf16.mxu0 0
        %474 = vmatpush1.bf16.msra.mxu0 0
        %475 = vmatprep.subr.bf16.mxu0 0
        %476 = vmatpush1.bf16.msra.mxu0 0
        %477 = vmatprep.subr.bf16.mxu0 0
        %478 = vmatpush1.bf16.msra.mxu0 0
        %479 = vmatprep.subr.bf16.mxu0 0
        %480 = vmatpush1.bf16.msra.mxu0 0
        %481 = vmatprep.subr.bf16.mxu0 0
        %482 = vmatpush1.bf16.msra.mxu0 0
        %483 = vmatprep.subr.bf16.mxu0 0
        %484 = vmatpush1.bf16.msra.mxu0 0
        %485 = vmatprep.subr.bf16.mxu0 0
        %486 = vmatpush1.bf16.msra.mxu0 0
        %487 = vmatprep.subr.bf16.mxu0 0
        %488 = vmatpush1.bf16.msra.mxu0 0
        %489 = vmatprep.subr.bf16.mxu0 0
        %490 = vmatpush1.bf16.msra.mxu0 0
        %491 = vmatprep.subr.bf16.mxu0 0
        %492 = vmatpush1.bf16.msra.mxu0 0
        %493 = vmatprep.mubr.bf16.mxu0 0
        %494 = vmatmul.mubr.bf16.gmra.mrb[0].mxu0 %v456
        %v495 = vpop.f32.mrb[0].mxu0
        %v496 = vadd.f32 0.0, %v495
        %v497 = vpop.f32.mrb[0].mxu0
        %v498 = vpop.f32.mrb[0].mxu0
        %v499 = vpop.f32.mrb[0].mxu0
        %500 = vdwg.mxu0
        %v501 = vadd.f32 %v450, %v496
        %s502 = scalar_lea.vmem %s276, 16
        %v503 = vld [vmem:[%s502] sm:$0xf]
        %s504 = scalar_lea.vmem %s272, 6
        %v505 = vld [vmem:[%s504] sm:$0x3]
        %v507 = vsel %vm298, %v503, 0
        %v510 = vsel %vm302, %v505, 0
        %512 = vmatprep.subr.bf16.mxu0 0
        %513 = vmatpush1.bf16.msra.mxu0 %v510
        %514 = vmatprep.subr.bf16.mxu0 0
        %515 = vmatpush1.bf16.msra.mxu0 0
        %516 = vmatprep.subr.bf16.mxu0 0
        %517 = vmatpush1.bf16.msra.mxu0 0
        %518 = vmatprep.subr.bf16.mxu0 0
        %519 = vmatpush1.bf16.msra.mxu0 0
        %520 = vmatprep.subr.bf16.mxu0 0
        %521 = vmatpush1.bf16.msra.mxu0 0
        %522 = vmatprep.subr.bf16.mxu0 0
        %523 = vmatpush1.bf16.msra.mxu0 0
        %524 = vmatprep.subr.bf16.mxu0 0
        %525 = vmatpush1.bf16.msra.mxu0 0
        %526 = vmatprep.subr.bf16.mxu0 0
        %527 = vmatpush1.bf16.msra.mxu0 0
        %528 = vmatprep.subr.bf16.mxu0 0
        %529 = vmatpush1.bf16.msra.mxu0 0
        %530 = vmatprep.subr.bf16.mxu0 0
        %531 = vmatpush1.bf16.msra.mxu0 0
        %532 = vmatprep.subr.bf16.mxu0 0
        %533 = vmatpush1.bf16.msra.mxu0 0
        %534 = vmatprep.subr.bf16.mxu0 0
        %535 = vmatpush1.bf16.msra.mxu0 0
        %536 = vmatprep.subr.bf16.mxu0 0
        %537 = vmatpush1.bf16.msra.mxu0 0
        %538 = vmatprep.subr.bf16.mxu0 0
        %539 = vmatpush1.bf16.msra.mxu0 0
        %540 = vmatprep.subr.bf16.mxu0 0
        %541 = vmatpush1.bf16.msra.mxu0 0
        %542 = vmatprep.subr.bf16.mxu0 0
        %543 = vmatpush1.bf16.msra.mxu0 0
        %544 = vmatprep.mubr.bf16.mxu0 0
        %545 = vmatmul.mubr.bf16.gmra.mrb[0].mxu0 %v507
        %v546 = vpop.f32.mrb[0].mxu0
        %v547 = vadd.f32 0.0, %v546
        %v548 = vpop.f32.mrb[0].mxu0
        %v549 = vpop.f32.mrb[0].mxu0
        %v550 = vpop.f32.mrb[0].mxu0
        %551 = vdwg.mxu0
        %v552 = vadd.f32 %v501, %v547
        %s553 = scalar_lea.vmem %s276, 20
        %v554 = vld [vmem:[%s553] sm:$0xf]
        %v557 = vunpack.c.l.s4 1983009808
        %v558 = vunpack.c.0.s8 %v557
        %v559 = vlaneseq
        %v560 = vshrl.u32 %v559, 7
        %v561 = vsub.s32 %v558, %v560
        %v562 = vrot.slane %v454, %v561
        %563 = vrot.lane.b32.xlu0 %v562, 127
        %v564 = vpop.permute.xlu0 %563
        %v566 = vsel %vm298, %v554, 0
        %v569 = vsel %vm302, %v564, 0
        %571 = vmatprep.subr.bf16.mxu0 0
        %572 = vmatpush1.bf16.msra.mxu0 %v569
        %573 = vmatprep.subr.bf16.mxu0 0
        %574 = vmatpush1.bf16.msra.mxu0 0
        %575 = vmatprep.subr.bf16.mxu0 0
        %576 = vmatpush1.bf16.msra.mxu0 0
        %577 = vmatprep.subr.bf16.mxu0 0
        %578 = vmatpush1.bf16.msra.mxu0 0
        %579 = vmatprep.subr.bf16.mxu0 0
        %580 = vmatpush1.bf16.msra.mxu0 0
        %581 = vmatprep.subr.bf16.mxu0 0
        %582 = vmatpush1.bf16.msra.mxu0 0
        %583 = vmatprep.subr.bf16.mxu0 0
        %584 = vmatpush1.bf16.msra.mxu0 0
        %585 = vmatprep.subr.bf16.mxu0 0
        %586 = vmatpush1.bf16.msra.mxu0 0
        %587 = vmatprep.subr.bf16.mxu0 0
        %588 = vmatpush1.bf16.msra.mxu0 0
        %589 = vmatprep.subr.bf16.mxu0 0
        %590 = vmatpush1.bf16.msra.mxu0 0
        %591 = vmatprep.subr.bf16.mxu0 0
        %592 = vmatpush1.bf16.msra.mxu0 0
        %593 = vmatprep.subr.bf16.mxu0 0
        %594 = vmatpush1.bf16.msra.mxu0 0
        %595 = vmatprep.subr.bf16.mxu0 0
        %596 = vmatpush1.bf16.msra.mxu0 0
        %597 = vmatprep.subr.bf16.mxu0 0
        %598 = vmatpush1.bf16.msra.mxu0 0
        %599 = vmatprep.subr.bf16.mxu0 0
        %600 = vmatpush1.bf16.msra.mxu0 0
        %601 = vmatprep.subr.bf16.mxu0 0
        %602 = vmatpush1.bf16.msra.mxu0 0
        %603 = vmatprep.mubr.bf16.mxu0 0
        %604 = vmatmul.mubr.bf16.gmra.mrb[0].mxu0 %v566
        %v605 = vpop.f32.mrb[0].mxu0
        %v606 = vadd.f32 0.0, %v605
        %v607 = vpop.f32.mrb[0].mxu0
        %v608 = vpop.f32.mrb[0].mxu0
        %v609 = vpop.f32.mrb[0].mxu0
        %610 = vdwg.mxu0
        %v611 = vadd.f32 %v552, %v606
        %s612 = scalar_lea.vmem %s276, 24
        %v613 = vld [vmem:[%s612] sm:$0xf]
        %v614 = vld [vmem:[%s272] sm:$0x3]
        %v617 = vunpack.c.l.s4 1983009808
        %v618 = vunpack.c.0.s8 %v617
        %v619 = vlaneseq
        %v620 = vshrl.u32 %v619, 7
        %v621 = vsub.s32 %v618, %v620
        %v622 = vrot.slane %v614, %v621
        %623 = vrot.lane.b32.xlu0 %v622, 119
        %v624 = vpop.permute.xlu0 %623
        %v626 = vsel %vm298, %v613, 0
        %v629 = vsel %vm302, %v624, 0
        %631 = vmatprep.subr.bf16.mxu0 0
        %632 = vmatpush1.bf16.msra.mxu0 %v629
        %633 = vmatprep.subr.bf16.mxu0 0
        %634 = vmatpush1.bf16.msra.mxu0 0
        %635 = vmatprep.subr.bf16.mxu0 0
        %636 = vmatpush1.bf16.msra.mxu0 0
        %637 = vmatprep.subr.bf16.mxu0 0
        %638 = vmatpush1.bf16.msra.mxu0 0
        %639 = vmatprep.subr.bf16.mxu0 0
        %640 = vmatpush1.bf16.msra.mxu0 0
        %641 = vmatprep.subr.bf16.mxu0 0
        %642 = vmatpush1.bf16.msra.mxu0 0
        %643 = vmatprep.subr.bf16.mxu0 0
        %644 = vmatpush1.bf16.msra.mxu0 0
        %645 = vmatprep.subr.bf16.mxu0 0
        %646 = vmatpush1.bf16.msra.mxu0 0
        %647 = vmatprep.subr.bf16.mxu0 0
        %648 = vmatpush1.bf16.msra.mxu0 0
        %649 = vmatprep.subr.bf16.mxu0 0
        %650 = vmatpush1.bf16.msra.mxu0 0
        %651 = vmatprep.subr.bf16.mxu0 0
        %652 = vmatpush1.bf16.msra.mxu0 0
        %653 = vmatprep.subr.bf16.mxu0 0
        %654 = vmatpush1.bf16.msra.mxu0 0
        %655 = vmatprep.subr.bf16.mxu0 0
        %656 = vmatpush1.bf16.msra.mxu0 0
        %657 = vmatprep.subr.bf16.mxu0 0
        %658 = vmatpush1.bf16.msra.mxu0 0
        %659 = vmatprep.subr.bf16.mxu0 0
        %660 = vmatpush1.bf16.msra.mxu0 0
        %661 = vmatprep.subr.bf16.mxu0 0
        %662 = vmatpush1.bf16.msra.mxu0 0
        %663 = vmatprep.mubr.bf16.mxu0 0
        %664 = vmatmul.mubr.bf16.gmra.mrb[0].mxu0 %v626
        %v665 = vpop.f32.mrb[0].mxu0
        %v666 = vadd.f32 0.0, %v665
        %v667 = vpop.f32.mrb[0].mxu0
        %v668 = vpop.f32.mrb[0].mxu0
        %v669 = vpop.f32.mrb[0].mxu0
        %670 = vdwg.mxu0
        %v671 = vadd.f32 %v611, %v666
        %s672 = scalar_lea.vmem %s276, 28
        %v673 = vld [vmem:[%s672] sm:$0xf]
        %v674 = vld [vmem:[%s296] sm:$0x3]
        %v677 = vunpack.c.l.s4 1983009808
        %v678 = vunpack.c.0.s8 %v677
        %v679 = vlaneseq
        %v680 = vshrl.u32 %v679, 7
        %v681 = vsub.s32 %v678, %v680
        %v682 = vrot.slane %v674, %v681
        %683 = vrot.lane.b32.xlu0 %v682, 119
        %v684 = vpop.permute.xlu0 %683
        %v686 = vsel %vm298, %v673, 0
        %v689 = vsel %vm302, %v684, 0
        %691 = vmatprep.subr.bf16.mxu0 0
        %692 = vmatpush1.bf16.msra.mxu0 %v689
        %693 = vmatprep.subr.bf16.mxu0 0
        %694 = vmatpush1.bf16.msra.mxu0 0
        %695 = vmatprep.subr.bf16.mxu0 0
        %696 = vmatpush1.bf16.msra.mxu0 0
        %697 = vmatprep.subr.bf16.mxu0 0
        %698 = vmatpush1.bf16.msra.mxu0 0
        %699 = vmatprep.subr.bf16.mxu0 0
        %700 = vmatpush1.bf16.msra.mxu0 0
        %701 = vmatprep.subr.bf16.mxu0 0
        %702 = vmatpush1.bf16.msra.mxu0 0
        %703 = vmatprep.subr.bf16.mxu0 0
        %704 = vmatpush1.bf16.msra.mxu0 0
        %705 = vmatprep.subr.bf16.mxu0 0
        %706 = vmatpush1.bf16.msra.mxu0 0
        %707 = vmatprep.subr.bf16.mxu0 0
        %708 = vmatpush1.bf16.msra.mxu0 0
        %709 = vmatprep.subr.bf16.mxu0 0
        %710 = vmatpush1.bf16.msra.mxu0 0
        %711 = vmatprep.subr.bf16.mxu0 0
        %712 = vmatpush1.bf16.msra.mxu0 0
        %713 = vmatprep.subr.bf16.mxu0 0
        %714 = vmatpush1.bf16.msra.mxu0 0
        %715 = vmatprep.subr.bf16.mxu0 0
        %716 = vmatpush1.bf16.msra.mxu0 0
        %717 = vmatprep.subr.bf16.mxu0 0
        %718 = vmatpush1.bf16.msra.mxu0 0
        %719 = vmatprep.subr.bf16.mxu0 0
        %720 = vmatpush1.bf16.msra.mxu0 0
        %721 = vmatprep.subr.bf16.mxu0 0
        %722 = vmatpush1.bf16.msra.mxu0 0
        %723 = vmatprep.mubr.bf16.mxu0 0
        %724 = vmatmul.mubr.bf16.gmra.mrb[0].mxu0 %v686
        %v725 = vpop.f32.mrb[0].mxu0
        %v726 = vadd.f32 0.0, %v725
        %v727 = vpop.f32.mrb[0].mxu0
        %v728 = vpop.f32.mrb[0].mxu0
        %v729 = vpop.f32.mrb[0].mxu0
        %730 = vdwg.mxu0
        %v731 = vadd.f32 %v671, %v726
        %s732 = scalar_lea.vmem %s276, 32
        %v733 = vld [vmem:[%s732] sm:$0xf]
        %v734 = vld [vmem:[%s272] sm:$0x3]
        %v737 = vunpack.c.l.s4 1983009808
        %v738 = vunpack.c.0.s8 %v737
        %v739 = vlaneseq
        %v740 = vshrl.u32 %v739, 7
        %v741 = vsub.s32 %v738, %v740
        %v742 = vrot.slane %v734, %v741
        %743 = vrot.lane.b32.xlu0 %v742, 118
        %v744 = vpop.permute.xlu0 %743
        %v746 = vsel %vm298, %v733, 0
        %v749 = vsel %vm302, %v744, 0
        %751 = vmatprep.subr.bf16.mxu0 0
        %752 = vmatpush1.bf16.msra.mxu0 %v749
        %753 = vmatprep.subr.bf16.mxu0 0
        %754 = vmatpush1.bf16.msra.mxu0 0
        %755 = vmatprep.subr.bf16.mxu0 0
        %756 = vmatpush1.bf16.msra.mxu0 0
        %757 = vmatprep.subr.bf16.mxu0 0
        %758 = vmatpush1.bf16.msra.mxu0 0
        %759 = vmatprep.subr.bf16.mxu0 0
        %760 = vmatpush1.bf16.msra.mxu0 0
        %761 = vmatprep.subr.bf16.mxu0 0
        %762 = vmatpush1.bf16.msra.mxu0 0
        %763 = vmatprep.subr.bf16.mxu0 0
        %764 = vmatpush1.bf16.msra.mxu0 0
        %765 = vmatprep.subr.bf16.mxu0 0
        %766 = vmatpush1.bf16.msra.mxu0 0
        %767 = vmatprep.subr.bf16.mxu0 0
        %768 = vmatpush1.bf16.msra.mxu0 0
        %769 = vmatprep.subr.bf16.mxu0 0
        %770 = vmatpush1.bf16.msra.mxu0 0
        %771 = vmatprep.subr.bf16.mxu0 0
        %772 = vmatpush1.bf16.msra.mxu0 0
        %773 = vmatprep.subr.bf16.mxu0 0
        %774 = vmatpush1.bf16.msra.mxu0 0
        %775 = vmatprep.subr.bf16.mxu0 0
        %776 = vmatpush1.bf16.msra.mxu0 0
        %777 = vmatprep.subr.bf16.mxu0 0
        %778 = vmatpush1.bf16.msra.mxu0 0
        %779 = vmatprep.subr.bf16.mxu0 0
        %780 = vmatpush1.bf16.msra.mxu0 0
        %781 = vmatprep.subr.bf16.mxu0 0
        %782 = vmatpush1.bf16.msra.mxu0 0
        %783 = vmatprep.mubr.bf16.mxu0 0
        %784 = vmatmul.mubr.bf16.gmra.mrb[0].mxu0 %v746
        %v785 = vpop.f32.mrb[0].mxu0
        %v786 = vadd.f32 0.0, %v785
        %v787 = vpop.f32.mrb[0].mxu0
        %v788 = vpop.f32.mrb[0].mxu0
        %v789 = vpop.f32.mrb[0].mxu0
        %790 = vdwg.mxu0
        %v791 = vadd.f32 %v731, %v786
        %v792 = vpack.c.bf16 %v791, %v791
        %vm793 = vcmask 584704
        %794 = vst.msk [vmem:[%s249] sm:$0xf] %vm793, %v792
        %v795 = vld [vmem:[%s2] sm:$0x1]
        %v797 = vlaneseq
        %v798 = vshrl.u32 %v797, 7
        %v799 = vsub.s32 0, %v798
        %v800 = vrot.slane %v795, %v799
        %v802 = vmul.f32 %v791, %v800
        %vm803 = vcmask 588800
        %v804 = vsel %vm803, %v802, 0.0
        %805 = vadd.xlane.f32.xlu0 %v804
        %v806 = vpop.xlane.xlu0 %805
        %vm807 = vcmask 7168
        %808 = vst.msk [vmem:[%s283] sm:$0xff] %vm807, %v806
        %v809 = vmul.f32 %v802, %v791
        %v810 = vsel %vm803, %v809, 0.0
        %811 = vadd.xlane.f32.xlu0 %v810
        %v812 = vpop.xlane.xlu0 %811
        %813 = vst.msk [vmem:[%s290] sm:$0xff] %vm807, %v812
        %s814 = sand.u32 %s115, 1
        %s815 = scalar_lea.sflag [#allocation3], %s814
        %s816 = sand.u32 %s115, 1
        %s817 = smul.addr %s816, 4
        %s818 = scalar_lea.vmem [#allocation2], %s817
        %p819 = scmp.lt.s32.totalorder %s24, 1
        %s820 = scalar_select %p819, %s24, 1
        %p821 = scmp.lt.s32.totalorder %s25, 0
        %s822 = scalar_select %p821, %s25, 0
        %s823 = sadd.s32 %s822, %s820
        %s824 = smul.addr %s823, 8
        %s825 = scalar_lea.vmem %s4, %s824
        %p826 = scmp.lt.s32.totalorder %s24, 1
        %s827 = scalar_select %p826, %s24, 1
        %p828 = scmp.lt.s32.totalorder %s25, 0
        %s829 = scalar_select %p828, %s25, 0
        %s830 = sadd.s32 %s829, %s827
        %s831 = smul.addr %s830, 8
        %s832 = scalar_lea.vmem %s5, %s831
        // Predicated region
        $region33: #{tpu_custom_call.1} parent=31 // pred_check
          %p833 = pneg %p125
        $region34: #{tpu_custom_call.1} parent=31 // pred_check_branch
          %835 = sbr.rel (%p833) target = $region36
        $region35: #{tpu_custom_call.1} parent=31 // pred_region
          %s837 = ssub.s32 64, 64
          %838 = vsyncadd %s815, %s837
          %s839 = sadd.s32 %s25, %s24
          %s840 = smul.addr %s839, 64
          %s841 = scalar_lea.hbm %s3, %s840
          %s843 = sshll.u32 %s818, 4
          %s844 = int_to_ptr.vmem [resolvable:$true] %s843
          %846 = dma.vmem_to_hbm [thread:$0]  %s844, 64, %s841, %s815
        $region36: #{tpu_custom_call.1} parent=31 // pred_fallthru
          _
        // Predicated region
        $region37: #{tpu_custom_call.1} parent=31 // pred_check
          %p847 = pneg %p153
        $region38: #{tpu_custom_call.1} parent=31 // pred_check_branch
          %849 = sbr.rel (%p847) target = $region40
        $region39: #{tpu_custom_call.1} parent=31 // pred_region
          _
        $region40: #{tpu_custom_call.1} parent=31 // pred_fallthru
          _
        // Predicated region
        $region41: #{tpu_custom_call.1} parent=31 // pred_check
          %p850 = pneg %p181
        $region42: #{tpu_custom_call.1} parent=31 // pred_check_branch
          %852 = sbr.rel (%p850) target = $region44
        $region43: #{tpu_custom_call.1} parent=31 // pred_region
          _
        $region44: #{tpu_custom_call.1} parent=31 // pred_fallthru
          _
      $region32: #{tpu_custom_call.1} parent=5 // pred_fallthru
        _
      %p853 = scmp.le.s32.totalorder 2, %s15
      // Predicated region
      $region45: #{tpu_custom_call.1} parent=5 // pred_check
        %p854 = pneg %p853
      $region46: #{tpu_custom_call.1} parent=5 // pred_check_branch
        %856 = sbr.rel (%p854) target = $region48
      $region47: #{tpu_custom_call.1} parent=5 // pred_region
        %s857 = ssub.s32 %s15, 2
        // Predicated region
        $region49: #{tpu_custom_call.1} parent=47 // pred_check
          %p858 = pneg %p131
        $region50: #{tpu_custom_call.1} parent=47 // pred_check_branch
          %860 = sbr.rel (%p858) target = $region52
        $region51: #{tpu_custom_call.1} parent=47 // pred_region
          %s861 = sand.u32 %s116, 1
          %s862 = scalar_lea.sflag [#allocation3], %s861
          %s863 = sand.u32 %s116, 1
          %s864 = smul.addr %s863, 4
          %s865 = scalar_lea.vmem [#allocation2], %s864
          %866 = dma.done %s862, 64
        $region52: #{tpu_custom_call.1} parent=47 // pred_fallthru
          _
        // Predicated region
        $region53: #{tpu_custom_call.1} parent=47 // pred_check
          %p867 = pneg %p159
        $region54: #{tpu_custom_call.1} parent=47 // pred_check_branch
          %869 = sbr.rel (%p867) target = $region56
        $region55: #{tpu_custom_call.1} parent=47 // pred_region
          %p870 = scmp.lt.s32.totalorder %s26, 1
          %s871 = scalar_select %p870, %s26, 1
          %p872 = scmp.lt.s32.totalorder %s27, 0
          %s873 = scalar_select %p872, %s27, 0
          %s874 = sadd.s32 %s873, %s871
          %s875 = smul.addr %s874, 8
          %s876 = scalar_lea.vmem %s4, %s875
        $region56: #{tpu_custom_call.1} parent=47 // pred_fallthru
          _
        // Predicated region
        $region57: #{tpu_custom_call.1} parent=47 // pred_check
          %p877 = pneg %p187
        $region58: #{tpu_custom_call.1} parent=47 // pred_check_branch
          %879 = sbr.rel (%p877) target = $region60
        $region59: #{tpu_custom_call.1} parent=47 // pred_region
          %p880 = scmp.lt.s32.totalorder %s26, 1
          %s881 = scalar_select %p880, %s26, 1
          %p882 = scmp.lt.s32.totalorder %s27, 0
          %s883 = scalar_select %p882, %s27, 0
          %s884 = sadd.s32 %s883, %s881
          %s885 = smul.addr %s884, 8
          %s886 = scalar_lea.vmem %s5, %s885
        $region60: #{tpu_custom_call.1} parent=47 // pred_fallthru
          _
      $region48: #{tpu_custom_call.1} parent=5 // pred_fallthru
        _
    $region6: #{tpu_custom_call.1} parent=1 // loop_footer
      %s19 = sadd.s32 1, %s15
    $region7: #{tpu_custom_call.1} parent=1 // loop_footer_branch
      %14 = sbr.rel target = $region3
    $region8: #{tpu_custom_call.1} parent=1 // loop_exit
      _
    %887 = vsyncpa [#allocation3], 1
    %s888 = scalar_lea.sflag [#allocation3], 1
    %889 = vsyncpa %s888, 1

</llo_original>
